<compile_context>
chip_gen: v5e
topology: v5e:2x2
jax: 0.10.0
libtpu: 0.0.40
codegen_flags: <defaults>
</compile_context>

<pallas_src>
import math

import numpy as np
import jax
import jax.numpy as jnp
from jax import lax
from jax.experimental import pallas as pl
from jax.experimental.pallas import tpu as pltpu

_EPS = 1e-8


def _round_up(x, n):
    return ((x + n - 1) // n) * n


def _vmem_budget_bytes():
    """Scoped-VMEM budget per pallas_call, gated on physical VMEM.
    128 MiB parts (v5e/v6e) -> 96 MiB; 64 MiB parts (v7x) / unknown -> 48 MiB."""
    cap = 64 * 1024 * 1024
    try:
        cap = int(getattr(pltpu.get_tpu_info(), "vmem_capacity_bytes", cap))
    except Exception:
        pass
    return (96 if cap >= 128 * 1024 * 1024 else 48) * 1024 * 1024


# ----------------------------------------------------------------------------
# Tile-size selection (formula-derived, no cliffs)
# ----------------------------------------------------------------------------
def _pick_dist_tiles(m, c, h, budget):
    """Row/label tiles for the distance kernel.  Prefer a single resident label
    tile (tc == c_pad) so the (tc, h) bf16 label block is streamed once total."""
    tm = min(512, _round_up(max(m, 1), 32))

    def usage(tm_, tc_):
        # double-buffered inputs + double-buffered output tile
        return 2 * (tm_ * h * 2 + tm_ * 4 + tc_ * h * 2 + tc_ * 4 + tm_ * tc_ * 4)

    tc = _round_up(max(c, 1), 128)
    cap = int(0.7 * budget)
    while usage(tm, tc) > cap and tc > 512:
        tc = max(512, _round_up(tc // 2, 128))
    while usage(tm, tc) > cap and tm > 32:
        tm = max(32, _round_up(tm // 2, 32))
    m_pad = _round_up(max(m, 1), tm)
    c_pad = _round_up(max(c, 1), tc)
    return tm, tc, m_pad, c_pad


def _pick_lift_tile(n_pad, h, budget, step):
    """Largest multiple of `step` dividing n_pad whose double-buffered
    f32-in + bf16-out + f32-time footprint stays under ~quarter of the budget."""
    best = step
    cap = budget // 4
    t = step
    while t <= n_pad:
        if 2 * t * (h * (4 + 2) + 4) > cap:
            break
        if n_pad % t == 0:
            best = t
        t += step
    return best


def _pick_loss_tile(m_pad, c_pad, budget):
    """Largest multiple of 32 dividing m_pad such that the double-buffered
    (f32 dist + packed int8 mask) row block fits half the VMEM budget."""
    bytes_per_row = c_pad * (4 + 1)
    best = 32
    t = 32
    while t <= m_pad:
        if 2 * t * bytes_per_row > budget // 2:
            break
        if m_pad % t == 0:
            best = t
        t += 32
    return best


# ----------------------------------------------------------------------------
# Kernel 1: Lorentz exp_map0 lift (run once per embedding table)
#   scalars = [sqrt(curv), 1/curv, exp(alpha)]
# ----------------------------------------------------------------------------
def _lift_kernel(scal_ref, emb_ref, xh_ref, time_ref):
    sqrt_c = scal_ref[0]
    inv_c = scal_ref[1]
    alpha = scal_ref[2]

    v = emb_ref[...].astype(jnp.float32) * alpha
    rc = sqrt_c * jnp.sqrt(jnp.sum(v * v, axis=-1, keepdims=True))
    s = jnp.maximum(rc, _EPS)
    # exact exp / divide: these touch only a (tile_rows, 1) column, so they are
    # free in this HBM-bound kernel and avoid vrcp error feeding sinh(s)/s.
    sinh = 0.5 * (jnp.exp(s) - jnp.exp(-s))
    xh = (sinh / s) * v                                    # exp_map0 space coords
    time_ref[...] = jnp.sqrt(inv_c + jnp.sum(xh * xh, axis=-1, keepdims=True))
    xh_ref[...] = xh.astype(xh_ref.dtype)                  # bf16 for the MXU matmul


def _lift(scalars, emb, tile_rows, vmem_limit):
    n, h = emb.shape
    return pl.pallas_call(
        _lift_kernel,
        out_shape=(jax.ShapeDtypeStruct((n, h), jnp.bfloat16),
                   jax.ShapeDtypeStruct((n, 1), jnp.float32)),
        grid=(n // tile_rows,),
        in_specs=[
            pl.BlockSpec(memory_space=pltpu.MemorySpace.SMEM),
            pl.BlockSpec((tile_rows, h), lambda i: (i, 0)),
        ],
        out_specs=(
            pl.BlockSpec((tile_rows, h), lambda i: (i, 0)),
            pl.BlockSpec((tile_rows, 1), lambda i: (i, 0)),
        ),
        compiler_params=pltpu.CompilerParams(
            dimension_semantics=("parallel",),
            vmem_limit_bytes=vmem_limit),
    )(scalars, emb)


# ----------------------------------------------------------------------------
# Kernel 2: tiled pairwise hyperbolic (Lorentz) distance
#   scalars = [curv, 1/sqrt(curv)]
#   xh : (m_pad, h) bf16   xt  : (m_pad, 1) f32
#   yh : (c_pad, h) bf16   ytr : (1, c_pad) f32
# ----------------------------------------------------------------------------
def _dist_kernel(scal_ref, xh_ref, xt_ref, yh_ref, yt_ref, dist_ref):
    curv = scal_ref[0]
    inv_sqrt_c = scal_ref[1]

    # bf16 x bf16 on the MXU with f32 accumulation; contract the shared h axis
    # of both operands directly (NT form) so no standalone label transpose pass
    # ever touches HBM.
    space = lax.dot_general(xh_ref[...], yh_ref[...],
                            dimension_numbers=(((1,), (1,)), ((), ())),
                            preferred_element_type=jnp.float32)
    # time outer product as a VPU broadcast multiply (a K=1 matmul would waste
    # an entire MXU pass per tile)
    lorentz_inner = space - xt_ref[...] * yt_ref[...]

    z = jnp.maximum(-curv * lorentz_inner, 1.0 + _EPS)
    # acosh(z) = log(z + sqrt((z-1)(z+1))) — well-conditioned near z = 1
    dist_ref[...] = jnp.log(z + jnp.sqrt((z - 1.0) * (z + 1.0))) * inv_sqrt_c


def _pairwise_hyperbolic_dist(scalars, xh, xt, yh, ytr, tm, tc, vmem_limit):
    m_pad, h = xh.shape
    c_pad, _ = yh.shape
    return pl.pallas_call(
        _dist_kernel,
        out_shape=jax.ShapeDtypeStruct((m_pad, c_pad), jnp.float32),
        grid=(m_pad // tm, c_pad // tc),
        in_specs=[
            pl.BlockSpec(memory_space=pltpu.MemorySpace.SMEM),
            pl.BlockSpec((tm, h), lambda i, j: (i, 0)),
            pl.BlockSpec((tm, 1), lambda i, j: (i, 0)),
            pl.BlockSpec((tc, h), lambda i, j: (j, 0)),   # resident when c_tiles==1
            pl.BlockSpec((1, tc), lambda i, j: (0, j)),
        ],
        out_specs=pl.BlockSpec((tm, tc), lambda i, j: (i, j)),
        compiler_params=pltpu.CompilerParams(
            dimension_semantics=("parallel", "parallel"),
            vmem_limit_bytes=vmem_limit),
    )(scalars, xh, xt, yh, ytr)


# ----------------------------------------------------------------------------
# Kernel 3: m-tiled contrastive loss reduction (packed int8 mask, per-tile
#           partial sums so the grid axis can be "parallel" / megacore-sharded)
#   scalars = [1/cl_temp, 1/batch_size]
#   mask    : 0 = neither, 1 = hard-negative only, 2 = positive
# ----------------------------------------------------------------------------
def _loss_kernel(scal_ref, dist_ref, mask_ref, out_ref):
    inv_temp = scal_ref[0]
    inv_m = scal_ref[1]

    s = dist_ref[...] * inv_temp                        # dist / temp  (tm, c_pad)
    mv = mask_ref[...].astype(jnp.float32)
    pos = (mv > 1.5).astype(jnp.float32)
    union = (mv > 0.5).astype(jnp.float32)

    # Numerically-stable log-sum-exp over the union (positives + hard negatives):
    # shift by the per-row min of s so exp never underflows for large dist/temp.
    big = jnp.float32(3.0e38)
    s_min = jnp.min(jnp.where(union > 0.0, s, big), axis=-1, keepdims=True)
    has_union = (jnp.sum(union, axis=-1, keepdims=True) > 0.0).astype(jnp.float32)
    s_min = s_min * has_union                           # 0 for padded rows
    shifted = jnp.where(union > 0.0, s_min - s, jnp.float32(-1e30))
    denom = jnp.sum(jnp.exp(shifted), axis=-1, keepdims=True)
    log_denom = jnp.log(jnp.maximum(denom, 1e-30)) - s_min

    per = pos * (s + log_denom)                         # -log softmax per positive
    pos_count = jnp.sum(pos, axis=-1, keepdims=True)
    sample = jnp.sum(per, axis=-1, keepdims=True) / jnp.maximum(pos_count, 1.0)

    partial = jnp.sum(sample) * inv_m                   # this tile's contribution
    out_ref[...] = jnp.full(out_ref.shape, partial, dtype=jnp.float32)


def _contrastive_loss(scalars, dist, mask, tile_m, vmem_limit):
    m_pad, c_pad = dist.shape
    n_tiles = m_pad // tile_m
    partials = pl.pallas_call(
        _loss_kernel,
        out_shape=jax.ShapeDtypeStruct((n_tiles, 8, 128), jnp.float32),
        grid=(n_tiles,),
        in_specs=[
            pl.BlockSpec(memory_space=pltpu.MemorySpace.SMEM),
            pl.BlockSpec((tile_m, c_pad), lambda i: (i, 0)),
            pl.BlockSpec((tile_m, c_pad), lambda i: (i, 0)),
        ],
        out_specs=pl.BlockSpec((1, 8, 128), lambda i: (i, 0, 0)),
        compiler_params=pltpu.CompilerParams(
            dimension_semantics=("parallel",),
            vmem_limit_bytes=vmem_limit),
    )(scalars, dist, mask)
    return jnp.sum(partials[:, 0, 0])


# ----------------------------------------------------------------------------
# Host-side hierarchy logic (mirrors the PyTorch module exactly)
# ----------------------------------------------------------------------------
def _collect_neg_siblings(pos_label, level_dict, pos_labels):
    label_level = {l: k for k, v in level_dict.items() for l in v}
    level = label_level[pos_label]
    all_labels_level = level_dict[level]
    if len(all_labels_level) == 1:
        return []
    return [l for l in all_labels_level if l not in pos_labels]


def _collect_neg_desc(pos, hier, pos_labels):
    collected = set(hier.get(pos, []))
    collected = {i for i in collected if i not in pos_labels}
    for value in list(collected):
        if value in hier:
            collected.update(_collect_neg_desc(value, hier, pos_labels))
    return collected


def _select_hard_negatives(dist_np, positive_labels, level_dict, hier):
    batch = []
    for i, pos_labels in enumerate(positive_labels):
        sample = []
        neg_sim = dist_np[i]
        for pos in pos_labels:
            neg_sibs = _collect_neg_siblings(pos, level_dict, pos_labels)
            if neg_sibs:
                sib_idx = min(neg_sibs, key=lambda idx: neg_sim[idx])
                if (sib_idx in sample and len(neg_sibs) > 1
                        and any(idx not in sample for idx in neg_sibs)):
                    sib_idx = min((idx for idx in neg_sibs if idx not in sample),
                                  key=lambda idx: neg_sim[idx])
                sample.append(sib_idx)
            neg_desc = list(_collect_neg_desc(pos, hier, pos_labels))
            if neg_desc:
                desc_idx = min(neg_desc, key=lambda idx: neg_sim[idx])
                sample.append(desc_idx)
        batch.append(list(set(sample)))
    return batch


# ----------------------------------------------------------------------------
# CLloss module (forward only)
# ----------------------------------------------------------------------------
class CLlossPallas:
    def __init__(self, level_dict, hier, cl_temp, curv_init=1.0, embed_dim=768):
        self.level_dict = level_dict
        self.hier = hier
        self.cl_temp = float(cl_temp)
        # Deterministic parameter init (matches the PyTorch __init__).
        self.log_curv = float(math.log(curv_init))
        self.log_text_alpha = float(math.log(embed_dim ** (-0.5)))
        self.log_label_alpha = float(math.log(embed_dim ** (-0.5)))

    def forward(self, text_embeddings, label_embeddings, target_labels_np):
        m, h = text_embeddings.shape
        c, _ = label_embeddings.shape

        curv = math.exp(self.log_curv)
        sqrt_c = math.sqrt(curv)

        budget = _vmem_budget_bytes()
        tm, tc, m_pad, c_pad = _pick_dist_tiles(m, c, h, budget)

        text_p = jnp.pad(jnp.asarray(text_embeddings, jnp.float32),
                         ((0, m_pad - m), (0, 0)))
        label_p = jnp.pad(jnp.asarray(label_embeddings, jnp.float32),
                          ((0, c_pad - c), (0, 0)))

        # --- lift to the hyperboloid ONCE (hoisted out of the tiled dist loop)
        text_scal = jnp.asarray(
            [sqrt_c, 1.0 / curv, math.exp(self.log_text_alpha)], dtype=jnp.float32)
        label_scal = jnp.asarray(
            [sqrt_c, 1.0 / curv, math.exp(self.log_label_alpha)], dtype=jnp.float32)
        xh, xt = _lift(text_scal, text_p,
                       _pick_lift_tile(m_pad, h, budget, 32), budget)
        yh, yt = _lift(label_scal, label_p,
                       _pick_lift_tile(c_pad, h, budget, 128), budget)

        # Label time coords as a lane-dense (1, c_pad) row (tiny vector); the
        # label space coords stay (c_pad, h) — the dist kernel contracts the h
        # axis of both operands so no full label transpose pass is needed.
        ytr = jnp.reshape(yt, (1, c_pad))

        dist_scal = jnp.asarray([curv, 1.0 / sqrt_c], dtype=jnp.float32)
        dist = _pairwise_hyperbolic_dist(dist_scal, xh, xt, yh, ytr,
                                         tm, tc, budget)

        # TODO(synk): data-dependent sibling/descendant hard-negative mining has
        # no clean Pallas equivalent; it runs host-side on the kernel output.
        dist_np = np.asarray(jax.device_get(dist))[:m, :c]
        positive_labels = [np.nonzero(row)[0].tolist() for row in target_labels_np]
        hard_negatives = _select_hard_negatives(dist_np, positive_labels,
                                                self.level_dict, self.hier)

        # Packed int8 mask halves the mask HBM traffic of the loss kernel:
        # 0 = neither, 1 = hard-negative only, 2 = positive.
        mask = np.zeros((m_pad, c_pad), dtype=np.int8)
        for i in range(m):
            mask[i, hard_negatives[i]] = 1
            mask[i, positive_labels[i]] = 2

        tm_loss = _pick_loss_tile(m_pad, c_pad, budget)
        loss_scal = jnp.asarray([1.0 / self.cl_temp, 1.0 / m], dtype=jnp.float32)
        loss = _contrastive_loss(loss_scal, dist, jnp.asarray(mask),
                                 tm_loss, budget)
        return loss, positive_labels, hard_negatives


# ----------------------------------------------------------------------------
# NumPy (float64) reference for a sanity check (bf16 MXU operands emulated)
# ----------------------------------------------------------------------------
def _bf16_round(x):
    return np.asarray(
        jnp.asarray(np.asarray(x, dtype=np.float32), dtype=jnp.bfloat16)
        .astype(jnp.float32)).astype(np.float64)


def _reference_loss(text, labels, positive_labels, hard_negatives,
                    log_curv, log_at, log_al, cl_temp):
    curv = np.exp(log_curv)
    x = text.astype(np.float64) * np.exp(log_at)
    y = labels.astype(np.float64) * np.exp(log_al)

    def exp_map0(v):
        rc = np.sqrt(curv) * np.linalg.norm(v, axis=-1, keepdims=True)
        si = np.maximum(rc, 1e-8)
        return np.sinh(si) * v / si

    xh, yh = exp_map0(x), exp_map0(y)
    xt = np.sqrt(1.0 / curv + np.sum(xh ** 2, -1, keepdims=True))
    yt = np.sqrt(1.0 / curv + np.sum(yh ** 2, -1, keepdims=True))
    inner = _bf16_round(xh) @ _bf16_round(yh).T - xt @ yt.T
    dist = np.arccosh(np.maximum(-curv * inner, 1.0 + 1e-8)) / np.sqrt(curv)

    loss = 0.0
    for i in range(text.shape[0]):
        pos, neg = positive_labels[i], hard_negatives[i]
        ps = -dist[i, pos] / cl_temp
        ns = -dist[i, neg] / cl_temp if len(neg) else np.zeros((0,))
        denom = np.sum(np.exp(np.concatenate([ps, ns])))
        loss += np.mean(-np.log(np.exp(ps) / denom))
    return loss / text.shape[0]


if __name__ == "__main__":
    # Small synthetic hierarchy over c = 16 labels (indices 0..15).
    level_dict = {1: [0, 1, 2, 3],
                  2: [4, 5, 6, 7, 8, 9, 10, 11],
                  3: [12, 13, 14, 15]}
    hier = {0: {4, 5}, 1: {6, 7}, 2: {8, 9}, 3: {10, 11},
            4: {12, 13}, 5: {14}, 6: {15}}

    m, c, h = 8, 16, 32
    cl_temp = 0.5

    key = jax.random.PRNGKey(0)
    k_text, k_label = jax.random.split(key)
    text_embeddings = jax.random.normal(k_text, (m, h), dtype=jnp.float32)
    label_embeddings = jax.random.normal(k_label, (c, h), dtype=jnp.float32)

    # Multi-hot targets: each sample gets a root-to-descendant path.
    paths = [[0, 4, 12], [0, 5, 14], [1, 6, 15], [1, 7],
             [2, 8], [2, 9], [3, 10], [3, 11]]
    target_labels = np.zeros((m, c), dtype=np.float32)
    for i, p in enumerate(paths):
        target_labels[i, p] = 1.0

    module = CLlossPallas(level_dict, hier, cl_temp, curv_init=1.0, embed_dim=h)
    loss, pos_labels, hard_negs = module.forward(text_embeddings,
                                                 label_embeddings,
                                                 target_labels)
    loss = jax.block_until_ready(loss)
    loss_val = float(np.asarray(loss))

    ref = _reference_loss(np.asarray(text_embeddings), np.asarray(label_embeddings),
                          pos_labels, hard_negs,
                          module.log_curv, module.log_text_alpha,
                          module.log_label_alpha, cl_temp)

    assert np.isfinite(loss_val), "kernel produced non-finite loss"
    assert np.allclose(loss_val, ref, rtol=2e-2, atol=2e-3), (loss_val, ref)
    print("KERNEL_OK")
</pallas_src>

<mosaic_0001>
module attributes {stable_mosaic.version = 11 : i64} {
  func.func @_lift_kernel(%arg0: i32, %arg1: memref<3xf32, #tpu.memory_space<smem>>, %arg2: memref<32x32xf32, #tpu.memory_space<vmem>>, %arg3: memref<32x32xbf16, #tpu.memory_space<vmem>>, %arg4: memref<32x1xf32, #tpu.memory_space<vmem>>) attributes {dimension_semantics = [#tpu.dimension_semantics<parallel>], iteration_bounds = array<i64: 1>, scalar_prefetch = 0 : i64, scratch_operands = 0 : i64, tpu.core_type = #tpu.core_type<tc>, window_params = [{transform_indices = @transform_0, window_bounds = array<i64: 3>}, {transform_indices = @transform_1, window_bounds = array<i64: 32, 32>}, {transform_indices = @transform_2, window_bounds = array<i64: 32, 32>}, {transform_indices = @transform_3, window_bounds = array<i64: 32, 1>}]} {
    %c0 = arith.constant 0 : index
    %0 = memref.load %arg1[%c0] : memref<3xf32, #tpu.memory_space<smem>>
    %c1 = arith.constant 1 : index
    %1 = memref.load %arg1[%c1] : memref<3xf32, #tpu.memory_space<smem>>
    %c2 = arith.constant 2 : index
    %2 = memref.load %arg1[%c2] : memref<3xf32, #tpu.memory_space<smem>>
    %c0_0 = arith.constant 0 : index
    %c0_1 = arith.constant 0 : index
    %3 = vector.load %arg2[%c0_0, %c0_1] : memref<32x32xf32, #tpu.memory_space<vmem>>, vector<32x32xf32>
    %4 = vector.broadcast %2 : f32 to vector<32x32xf32>
    %5 = arith.mulf %3, %4 : vector<32x32xf32>
    %6 = arith.mulf %5, %5 : vector<32x32xf32>
    %cst = arith.constant dense<0.000000e+00> : vector<32xf32>
    %7 = vector.multi_reduction <add>, %6, %cst [1] : vector<32x32xf32> to vector<32xf32>
    %8 = vector.shape_cast %7 : vector<32xf32> to vector<32x1xf32>
    %9 = math.sqrt %8 : vector<32x1xf32>
    %10 = vector.broadcast %0 : f32 to vector<32x1xf32>
    %11 = arith.mulf %10, %9 : vector<32x1xf32>
    %cst_2 = arith.constant 9.99999993E-9 : f32
    %12 = vector.broadcast %cst_2 : f32 to vector<32x1xf32>
    %13 = arith.maximumf %11, %12 : vector<32x1xf32>
    %14 = math.exp %13 : vector<32x1xf32>
    %cst_3 = arith.constant 0.000000e+00 : f32
    %15 = vector.broadcast %cst_3 : f32 to vector<32x1xf32>
    %16 = arith.subf %15, %13 : vector<32x1xf32>
    %17 = math.exp %16 : vector<32x1xf32>
    %18 = arith.subf %14, %17 : vector<32x1xf32>
    %cst_4 = arith.constant 5.000000e-01 : f32
    %19 = vector.broadcast %cst_4 : f32 to vector<32x1xf32>
    %20 = arith.mulf %19, %18 : vector<32x1xf32>
    %21 = arith.divf %20, %13 : vector<32x1xf32>
    %22 = vector.broadcast %21 : vector<32x1xf32> to vector<32x32xf32>
    %23 = arith.mulf %22, %5 : vector<32x32xf32>
    %24 = arith.mulf %23, %23 : vector<32x32xf32>
    %cst_5 = arith.constant dense<0.000000e+00> : vector<32xf32>
    %25 = vector.multi_reduction <add>, %24, %cst_5 [1] : vector<32x32xf32> to vector<32xf32>
    %26 = vector.shape_cast %25 : vector<32xf32> to vector<32x1xf32>
    %27 = vector.broadcast %1 : f32 to vector<32x1xf32>
    %28 = arith.addf %27, %26 : vector<32x1xf32>
    %29 = math.sqrt %28 : vector<32x1xf32>
    %c0_6 = arith.constant 0 : index
    %c0_7 = arith.constant 0 : index
    %30 = vector.load %arg4[%c0_6, %c0_7] : memref<32x1xf32, #tpu.memory_space<vmem>>, vector<32x1xf32>
    tpu.vector_store %arg4[%c0_6, %c0_7], %29 {strides = array<i32>} : memref<32x1xf32, #tpu.memory_space<vmem>>, vector<32x1xf32>,
    %31 = arith.truncf %23 : vector<32x32xf32> to vector<32x32xbf16>
    %c0_8 = arith.constant 0 : index
    %c0_9 = arith.constant 0 : index
    %32 = vector.load %arg3[%c0_8, %c0_9] : memref<32x32xbf16, #tpu.memory_space<vmem>>, vector<32x32xbf16>
    tpu.vector_store %arg3[%c0_8, %c0_9], %31 {strides = array<i32>} : memref<32x32xbf16, #tpu.memory_space<vmem>>, vector<32x32xbf16>,
    return
  }
  func.func @transform_0(%arg0: i32) -> i32 {
    %c0_i32 = arith.constant 0 : i32
    %c0_i32_0 = arith.constant 0 : i32
    return %c0_i32 : i32
  }
  func.func @transform_1(%arg0: i32) -> (i32, i32) {
    %c0_i32 = arith.constant 0 : i32
    %c0_i32_0 = arith.constant 0 : i32
    return %arg0, %c0_i32 : i32, i32
  }
  func.func @transform_2(%arg0: i32) -> (i32, i32) {
    %c0_i32 = arith.constant 0 : i32
    %c0_i32_0 = arith.constant 0 : i32
    return %arg0, %c0_i32 : i32, i32
  }
  func.func @transform_3(%arg0: i32) -> (i32, i32) {
    %c0_i32 = arith.constant 0 : i32
    %c0_i32_0 = arith.constant 0 : i32
    return %arg0, %c0_i32 : i32, i32
  }
}

</mosaic_0001>

<llo_original>
// kernel: tpu_custom_call.1
$region0: #{tpu_custom_call.1}
  #allocation0 [shape = 'u32[]', space=smem, size = 0x4, offset = 0x4, fixed_abs, tag = 'smem constant byte address 0x4 - core index']
  #allocation1 [shape = 'u32[72,128]{1,0:T(1,128)}', space=vmem, size = 0x9000, scoped, tag = 'internal scratch']
  %s0 = inlined_call_operand.hbm [shape: f32[3], index: 0, kind: input, shape index: {}]
  %s1 = inlined_call_operand.hbm [shape: f32[32,32], index: 1, kind: input, shape index: {}]
  %s2 = inlined_call_operand.hbm [shape: bf16[32,32], index: 2, kind: output, shape index: {0}]
  %s3 = inlined_call_operand.vmem [shape: f32[32,1], index: 3, kind: output, shape index: {1}]
  %4 = xla_tuple %s2, %s3
  %s5 = sld [smem:[#allocation0]]
  $region34: #{tpu_custom_call.1} parent=0
    _
  %s7 = ssub.s32 1, %s5
  %s8 = scalar_select 0, %s7, %s5
  $region1: #{tpu_custom_call.1} parent=0
    #allocation2 [shape = 'u8[512]{0}', space=smem, size = 0x200, scoped, tag = 'input window, operand 0, single buffered']
    #allocation3 [shape = 's32[1]{0}', space=sflag, size = 0x4, scoped, tag = 'scoped memory for tpu_custom_call.1']
    #allocation4 [shape = 's32[1]{0}', space=sflag, size = 0x4, scoped, tag = 'scoped memory for tpu_custom_call.1']
    #allocation5 [shape = 's32[1]{0}', space=sflag, size = 0x4, scoped, tag = 'scoped memory for tpu_custom_call.1']
    #allocation6 [shape = 'u8[16384]{0}', space=vmem, size = 0x4000, scoped, tag = 'input window, operand 1, single buffered']
    #allocation7 [shape = 'u8[8192]{0}', space=vmem, size = 0x2000, scoped, tag = 'output window, operand 0, single buffered']
    %9 = vsyncpa [#allocation5], 0
    %10 = vsyncpa [#allocation3], 0
    %11 = vsyncpa [#allocation4], 0
    // Predicated region
    $region2: #{tpu_custom_call.1} parent=1 // pred_check
      _
    $region3: #{tpu_custom_call.1} parent=1 // pred_check_branch
      %13 = sbr.rel (0) target = $region5
    $region4: #{tpu_custom_call.1} parent=1 // pred_region
      %15 = vsyncadd [#allocation5], 0
      %s17 = sshll.u32 %s0, 4
      %s18 = int_to_ptr.hbm [resolvable:$true] %s17
      %20 = dma.hbm_to_smem %s18, 16, [#allocation2], [#allocation5]
    $region5: #{tpu_custom_call.1} parent=1 // pred_fallthru
      _
    // Predicated region
    $region6: #{tpu_custom_call.1} parent=1 // pred_check
      _
    $region7: #{tpu_custom_call.1} parent=1 // pred_check_branch
      %22 = sbr.rel (0) target = $region9
    $region8: #{tpu_custom_call.1} parent=1 // pred_region
      %24 = vsyncadd [#allocation3], 0
      %s25 = sshll.u32 %s1, 4
      %s26 = int_to_ptr.hbm [resolvable:$true] %s25
      %s27 = sshll.u32 [#allocation6], 4
      %s28 = int_to_ptr.vmem [resolvable:$true] %s27
      %33 = dma.hbm_to_vmem [thread:$0]  %s26, 512, %s28, [#allocation3], 128, 128, 8
    $region9: #{tpu_custom_call.1} parent=1 // pred_fallthru
      _
    // Predicated region
    $region10: #{tpu_custom_call.1} parent=1 // pred_check
      _
    $region11: #{tpu_custom_call.1} parent=1 // pred_check_branch
      %35 = sbr.rel (0) target = $region13
    $region12: #{tpu_custom_call.1} parent=1 // pred_region
      %37 = dma.done [#allocation5], 16
    $region13: #{tpu_custom_call.1} parent=1 // pred_fallthru
      _
    // Predicated region
    $region14: #{tpu_custom_call.1} parent=1 // pred_check
      _
    $region15: #{tpu_custom_call.1} parent=1 // pred_check_branch
      %39 = sbr.rel (0) target = $region17
    $region16: #{tpu_custom_call.1} parent=1 // pred_region
      %41 = dma.done [#allocation3], 512
    $region17: #{tpu_custom_call.1} parent=1 // pred_fallthru
      _
    %42 = sfence
    %s43 = sld [smem:[#allocation2]]
    %s44 = sld [smem:[#allocation2 + $0x1]]
    %s45 = sld [smem:[#allocation2 + $0x2]]
    %v46 = vld [vmem:[#allocation6] sm:$0xff]
    %v47 = vld [vmem:[#allocation6 + $0x8] sm:$0xff]
    %v48 = vld [vmem:[#allocation6 + $0x10] sm:$0xff]
    %v49 = vld [vmem:[#allocation6 + $0x18] sm:$0xff]
    %v50 = vstv %s45
    %v51 = vmul.f32 %v46, %v50
    %v52 = vmul.f32 %v47, %v50
    %v53 = vmul.f32 %v48, %v50
    %v54 = vmul.f32 %v49, %v50
    %v55 = vmul.f32 %v51, %v51
    %v56 = vmul.f32 %v52, %v52
    %v57 = vmul.f32 %v53, %v53
    %v58 = vmul.f32 %v54, %v54
    %vm59 = vcmask 261120
    %v60 = vsel %vm59, %v55, 0.0
    %61 = vadd.xlane.f32.xlu0 %v60
    %v62 = vpop.xlane.xlu0 %61
    %v63 = vsel %vm59, %v56, 0.0
    %64 = vadd.xlane.f32.xlu0 %v63
    %v65 = vpop.xlane.xlu0 %64
    %v66 = vsel %vm59, %v57, 0.0
    %67 = vadd.xlane.f32.xlu0 %v66
    %v68 = vpop.xlane.xlu0 %67
    %v69 = vsel %vm59, %v58, 0.0
    %70 = vadd.xlane.f32.xlu0 %v69
    %v71 = vpop.xlane.xlu0 %70
    %v72 = vrsqrt.pop %v62
    %v73 = vmul.f32 %v72, %v62
    %v74 = vmul.f32 %v73, %v72
    %v75 = vmul.f32 0.5, %v74
    %v76 = vsub.f32 1.5, %v75
    %v77 = vmul.f32 %v72, %v76
    %v78 = vmul.f32 %v62, %v77
    %vm79 = vcmp.eq.f32.partialorder %v62, inf
    %v80 = vsel %vm79, %v62, %v78
    %vm81 = vcmp.eq.f32.partialorder %v62, 0.0
    %v82 = vand.u32 %v62, 2147483648
    %v83 = vsel %vm81, %v82, %v80
    %v84 = vrsqrt.pop %v65
    %v85 = vmul.f32 %v84, %v65
    %v86 = vmul.f32 %v85, %v84
    %v87 = vmul.f32 0.5, %v86
    %v88 = vsub.f32 1.5, %v87
    %v89 = vmul.f32 %v84, %v88
    %v90 = vmul.f32 %v65, %v89
    %vm91 = vcmp.eq.f32.partialorder %v65, inf
    %v92 = vsel %vm91, %v65, %v90
    %vm93 = vcmp.eq.f32.partialorder %v65, 0.0
    %v94 = vand.u32 %v65, 2147483648
    %v95 = vsel %vm93, %v94, %v92
    %v96 = vrsqrt.pop %v68
    %v97 = vmul.f32 %v96, %v68
    %v98 = vmul.f32 %v97, %v96
    %v99 = vmul.f32 0.5, %v98
    %v100 = vsub.f32 1.5, %v99
    %v101 = vmul.f32 %v96, %v100
    %v102 = vmul.f32 %v68, %v101
    %vm103 = vcmp.eq.f32.partialorder %v68, inf
    %v104 = vsel %vm103, %v68, %v102
    %vm105 = vcmp.eq.f32.partialorder %v68, 0.0
    %v106 = vand.u32 %v68, 2147483648
    %v107 = vsel %vm105, %v106, %v104
    %v108 = vrsqrt.pop %v71
    %v109 = vmul.f32 %v108, %v71
    %v110 = vmul.f32 %v109, %v108
    %v111 = vmul.f32 0.5, %v110
    %v112 = vsub.f32 1.5, %v111
    %v113 = vmul.f32 %v108, %v112
    %v114 = vmul.f32 %v71, %v113
    %vm115 = vcmp.eq.f32.partialorder %v71, inf
    %v116 = vsel %vm115, %v71, %v114
    %vm117 = vcmp.eq.f32.partialorder %v71, 0.0
    %v118 = vand.u32 %v71, 2147483648
    %v119 = vsel %vm117, %v118, %v116
    %v120 = vstv %s43
    %v121 = vmul.f32 %v120, %v83
    %v122 = vmul.f32 %v120, %v95
    %v123 = vmul.f32 %v120, %v107
    %v124 = vmul.f32 %v120, %v119
    %v125 = vmax.f32 %v121, 1e-08
    %v126 = vmax.f32 %v122, 1e-08
    %v127 = vmax.f32 %v123, 1e-08
    %v128 = vmax.f32 %v124, 1e-08
    %v129 = vmul.f32 %v125, 1.442695
    %v130 = vpow.pop %v129
    %v131 = vmul.f32 %v126, 1.442695
    %v132 = vpow.pop %v131
    %v133 = vmul.f32 %v127, 1.442695
    %v134 = vpow.pop %v133
    %v135 = vmul.f32 %v128, 1.442695
    %v136 = vpow.pop %v135
    %v137 = vsub.f32 0.0, %v125
    %v138 = vsub.f32 0.0, %v126
    %v139 = vsub.f32 0.0, %v127
    %v140 = vsub.f32 0.0, %v128
    %v141 = vmul.f32 %v137, 1.442695
    %v142 = vpow.pop %v141
    %v143 = vmul.f32 %v138, 1.442695
    %v144 = vpow.pop %v143
    %v145 = vmul.f32 %v139, 1.442695
    %v146 = vpow.pop %v145
    %v147 = vmul.f32 %v140, 1.442695
    %v148 = vpow.pop %v147
    %v149 = vsub.f32 %v130, %v142
    %v150 = vsub.f32 %v132, %v144
    %v151 = vsub.f32 %v134, %v146
    %v152 = vsub.f32 %v136, %v148
    %v153 = vmul.f32 %v149, 0.5
    %v154 = vmul.f32 %v150, 0.5
    %v155 = vmul.f32 %v151, 0.5
    %v156 = vmul.f32 %v152, 0.5
    %v157 = vrcp.pop %v125
    %v158 = vmul.f32 %v125, %v157
    %v159 = vsub.f32 1.0, %v158
    %v160 = vmul.f32 %v157, %v159
    %v161 = vadd.f32 %v157, %v160
    %vm162 = vweird.f32 %v125
    %vm163 = vweird.f32 %v157
    %vm164 = vmor %vm162, %vm163
    %v165 = vsel %vm164, %v157, %v161
    %v166 = vand.u32 2147483647, %v125
    %vm167 = vcmp.eq.f32.partialorder %v166, 8.507059e+37
    %v168 = vand.u32 %v125, 2147483648
    %v169 = vor.u32 1.1754944e-38, %v168
    %v170 = vsel %vm167, %v169, %v165
    %v171 = vmul.f32 %v153, %v170
    %v172 = vrcp.pop %v126
    %v173 = vmul.f32 %v126, %v172
    %v174 = vsub.f32 1.0, %v173
    %v175 = vmul.f32 %v172, %v174
    %v176 = vadd.f32 %v172, %v175
    %vm177 = vweird.f32 %v126
    %vm178 = vweird.f32 %v172
    %vm179 = vmor %vm177, %vm178
    %v180 = vsel %vm179, %v172, %v176
    %v181 = vand.u32 2147483647, %v126
    %vm182 = vcmp.eq.f32.partialorder %v181, 8.507059e+37
    %v183 = vand.u32 %v126, 2147483648
    %v184 = vor.u32 1.1754944e-38, %v183
    %v185 = vsel %vm182, %v184, %v180
    %v186 = vmul.f32 %v154, %v185
    %v187 = vrcp.pop %v127
    %v188 = vmul.f32 %v127, %v187
    %v189 = vsub.f32 1.0, %v188
    %v190 = vmul.f32 %v187, %v189
    %v191 = vadd.f32 %v187, %v190
    %vm192 = vweird.f32 %v127
    %vm193 = vweird.f32 %v187
    %vm194 = vmor %vm192, %vm193
    %v195 = vsel %vm194, %v187, %v191
    %v196 = vand.u32 2147483647, %v127
    %vm197 = vcmp.eq.f32.partialorder %v196, 8.507059e+37
    %v198 = vand.u32 %v127, 2147483648
    %v199 = vor.u32 1.1754944e-38, %v198
    %v200 = vsel %vm197, %v199, %v195
    %v201 = vmul.f32 %v155, %v200
    %v202 = vrcp.pop %v128
    %v203 = vmul.f32 %v128, %v202
    %v204 = vsub.f32 1.0, %v203
    %v205 = vmul.f32 %v202, %v204
    %v206 = vadd.f32 %v202, %v205
    %vm207 = vweird.f32 %v128
    %vm208 = vweird.f32 %v202
    %vm209 = vmor %vm207, %vm208
    %v210 = vsel %vm209, %v202, %v206
    %v211 = vand.u32 2147483647, %v128
    %vm212 = vcmp.eq.f32.partialorder %v211, 8.507059e+37
    %v213 = vand.u32 %v128, 2147483648
    %v214 = vor.u32 1.1754944e-38, %v213
    %v215 = vsel %vm212, %v214, %v210
    %v216 = vmul.f32 %v156, %v215
    %v217 = vmul.f32 %v171, %v51
    %v218 = vmul.f32 %v186, %v52
    %v219 = vmul.f32 %v201, %v53
    %v220 = vmul.f32 %v216, %v54
    %v221 = vmul.f32 %v217, %v217
    %v222 = vmul.f32 %v218, %v218
    %v223 = vmul.f32 %v219, %v219
    %v224 = vmul.f32 %v220, %v220
    %v225 = vsel %vm59, %v221, 0.0
    %226 = vadd.xlane.f32.xlu0 %v225
    %v227 = vpop.xlane.xlu0 %226
    %v228 = vsel %vm59, %v222, 0.0
    %229 = vadd.xlane.f32.xlu0 %v228
    %v230 = vpop.xlane.xlu0 %229
    %v231 = vsel %vm59, %v223, 0.0
    %232 = vadd.xlane.f32.xlu0 %v231
    %v233 = vpop.xlane.xlu0 %232
    %v234 = vsel %vm59, %v224, 0.0
    %235 = vadd.xlane.f32.xlu0 %v234
    %v236 = vpop.xlane.xlu0 %235
    %v237 = vstv %s44
    %v238 = vadd.f32 %v237, %v227
    %v239 = vadd.f32 %v237, %v230
    %v240 = vadd.f32 %v237, %v233
    %v241 = vadd.f32 %v237, %v236
    %v242 = vrsqrt.pop %v238
    %v243 = vmul.f32 %v242, %v238
    %v244 = vmul.f32 %v243, %v242
    %v245 = vmul.f32 0.5, %v244
    %v246 = vsub.f32 1.5, %v245
    %v247 = vmul.f32 %v242, %v246
    %v248 = vmul.f32 %v238, %v247
    %vm249 = vcmp.eq.f32.partialorder %v238, inf
    %v250 = vsel %vm249, %v238, %v248
    %vm251 = vcmp.eq.f32.partialorder %v238, 0.0
    %v252 = vand.u32 %v238, 2147483648
    %v253 = vsel %vm251, %v252, %v250
    %v254 = vrsqrt.pop %v239
    %v255 = vmul.f32 %v254, %v239
    %v256 = vmul.f32 %v255, %v254
    %v257 = vmul.f32 0.5, %v256
    %v258 = vsub.f32 1.5, %v257
    %v259 = vmul.f32 %v254, %v258
    %v260 = vmul.f32 %v239, %v259
    %vm261 = vcmp.eq.f32.partialorder %v239, inf
    %v262 = vsel %vm261, %v239, %v260
    %vm263 = vcmp.eq.f32.partialorder %v239, 0.0
    %v264 = vand.u32 %v239, 2147483648
    %v265 = vsel %vm263, %v264, %v262
    %v266 = vrsqrt.pop %v240
    %v267 = vmul.f32 %v266, %v240
    %v268 = vmul.f32 %v267, %v266
    %v269 = vmul.f32 0.5, %v268
    %v270 = vsub.f32 1.5, %v269
    %v271 = vmul.f32 %v266, %v270
    %v272 = vmul.f32 %v240, %v271
    %vm273 = vcmp.eq.f32.partialorder %v240, inf
    %v274 = vsel %vm273, %v240, %v272
    %vm275 = vcmp.eq.f32.partialorder %v240, 0.0
    %v276 = vand.u32 %v240, 2147483648
    %v277 = vsel %vm275, %v276, %v274
    %v278 = vrsqrt.pop %v241
    %v279 = vmul.f32 %v278, %v241
    %v280 = vmul.f32 %v279, %v278
    %v281 = vmul.f32 0.5, %v280
    %v282 = vsub.f32 1.5, %v281
    %v283 = vmul.f32 %v278, %v282
    %v284 = vmul.f32 %v241, %v283
    %vm285 = vcmp.eq.f32.partialorder %v241, inf
    %v286 = vsel %vm285, %v241, %v284
    %vm287 = vcmp.eq.f32.partialorder %v241, 0.0
    %v288 = vand.u32 %v241, 2147483648
    %v289 = vsel %vm287, %v288, %v286
    %vm290 = vcmask 7168
    %291 = vst.msk [vmem:[%s3] sm:$0xff] %vm290, %v253
    %292 = vst.msk [vmem:[%s3 + $0x8] sm:$0xff] %vm290, %v265
    %293 = vst.msk [vmem:[%s3 + $0x10] sm:$0xff] %vm290, %v277
    %294 = vst.msk [vmem:[%s3 + $0x18] sm:$0xff] %vm290, %v289
    %v295 = vpack.c.bf16 %v217, %v217
    %v296 = vpack.c.bf16 %v218, %v218
    %v297 = vpack.c.bf16 %v219, %v219
    %v298 = vpack.c.bf16 %v220, %v220
    %vm299 = vcmask 257024
    %300 = vst.msk [vmem:[#allocation7] sm:$0xf] %vm299, %v295
    %301 = vst.msk [vmem:[#allocation7 + $0x4] sm:$0xf] %vm299, %v296
    %302 = vst.msk [vmem:[#allocation7 + $0x8] sm:$0xf] %vm299, %v297
    %303 = vst.msk [vmem:[#allocation7 + $0xc] sm:$0xf] %vm299, %v298
    // Predicated region
    $region18: #{tpu_custom_call.1} parent=1 // pred_check
      _
    $region19: #{tpu_custom_call.1} parent=1 // pred_check_branch
      %305 = sbr.rel (0) target = $region21
    $region20: #{tpu_custom_call.1} parent=1 // pred_region
      %307 = vsyncadd [#allocation4], 0
      %s308 = sshll.u32 [#allocation7], 4
      %s309 = int_to_ptr.vmem [resolvable:$true] %s308
      %s310 = sshll.u32 %s2, 4
      %s311 = int_to_ptr.hbm [resolvable:$true] %s310
      %316 = dma.vmem_to_hbm [thread:$0]  %s309, 256, %s311, [#allocation4], 64, 64, 4
    $region21: #{tpu_custom_call.1} parent=1 // pred_fallthru
      _
    // Predicated region
    $region22: #{tpu_custom_call.1} parent=1 // pred_check
      _
    $region23: #{tpu_custom_call.1} parent=1 // pred_check_branch
      %318 = sbr.rel (0) target = $region25
    $region24: #{tpu_custom_call.1} parent=1 // pred_region
      _
    $region25: #{tpu_custom_call.1} parent=1 // pred_fallthru
      _
    // Predicated region
    $region26: #{tpu_custom_call.1} parent=1 // pred_check
      _
    $region27: #{tpu_custom_call.1} parent=1 // pred_check_branch
      %320 = sbr.rel (0) target = $region29
    $region28: #{tpu_custom_call.1} parent=1 // pred_region
      %322 = dma.done [#allocation4], 256
    $region29: #{tpu_custom_call.1} parent=1 // pred_fallthru
      _
    // Predicated region
    $region30: #{tpu_custom_call.1} parent=1 // pred_check
      _
    $region31: #{tpu_custom_call.1} parent=1 // pred_check_branch
      %324 = sbr.rel (0) target = $region33
    $region32: #{tpu_custom_call.1} parent=1 // pred_region
      _
    $region33: #{tpu_custom_call.1} parent=1 // pred_fallthru
      _
    %325 = vsyncpa [#allocation3], 1
    %326 = vsyncpa [#allocation4], 1
    %327 = vsyncpa [#allocation5], 1

</llo_original>
